<compile_context>
chip_gen: v7x
topology: tpu7x:2x2x1
jax: 0.10.0
libtpu: 0.0.40
codegen_flags: <defaults>
</compile_context>

<pallas_src>
import jax
import jax.numpy as jnp
from jax import lax
from jax.experimental import pallas as pl
from jax.experimental.pallas import tpu as pltpu


def _round_up(x, m):
    return (x + m - 1) // m * m


def _discriminator_kernel(x_ref, w1_ref, b1_ref, w2_ref, b2_ref, w3_ref, b3_ref, o_ref):
    # In-kernel f32 -> bf16 cast (VPU, hidden under the MXU) so the wrapper never
    # makes a separate convert pass over x in HBM.
    x = x_ref[...].astype(jnp.bfloat16)                             # (tb, in)

    # Layer 1: Linear + LeakyReLU(0.2). bf16 MXU inputs, f32 accumulate/epilogue.
    h1 = jnp.dot(x, w1_ref[...], preferred_element_type=jnp.float32) + b1_ref[...]
    h1 = jnp.maximum(h1, 0.2 * h1)                                  # LeakyReLU (2 VALU ops)

    # Layer 2: Linear + LeakyReLU(0.2).
    h2 = jnp.dot(h1.astype(jnp.bfloat16), w2_ref[...],
                 preferred_element_type=jnp.float32) + b2_ref[...]
    h2 = jnp.maximum(h2, 0.2 * h2)

    # Layer 3: (1, h) x (tb, h) contracted on h -> lane-dense (1, tb) logits row.
    # Transposed-RHS contraction (same pattern as flash-attn q.k^T) -> native MXU
    # matmul, no full h2 transpose through the XLU; store is an unmasked dense row.
    logits = lax.dot_general(
        w3_ref[...], h2.astype(jnp.bfloat16),
        dimension_numbers=(((1,), (1,)), ((), ())),
        preferred_element_type=jnp.float32)                         # (1, tb)
    o_ref[...] = jax.nn.sigmoid(logits + b3_ref[0]).astype(o_ref.dtype)


def _device_info():
    """Best-effort TPU generation / VMEM-capacity detection."""
    kind = ""
    try:
        kind = jax.devices()[0].device_kind.lower().replace(" ", "")
    except Exception:
        pass
    is_v7 = ("v7" in kind) or ("tpu7" in kind)
    vmem_cap = None
    try:
        vmem_cap = int(pltpu.get_tpu_info().vmem_capacity_bytes)
    except Exception:
        pass
    if not vmem_cap or vmem_cap <= 0:
        vmem_cap = (64 << 20) if is_v7 else (128 << 20)
    return is_v7, vmem_cap


def discriminator_forward(x, params, *, batch_block=None):
    """Fused 3-layer MLP discriminator forward on TPU via Pallas.

    x: (B, input_dim) float32
    params: dict with w1 (in,h), b1 (1,h), w2 (h,h), b2 (1,h), w3 (h,1), b3 (1,1)
    Returns (B, 1) float32 probabilities.
    """
    w1, b1, w2, b2, w3, b3 = (params[k] for k in ("w1", "b1", "w2", "b2", "w3", "b3"))
    B, input_dim = x.shape
    hidden_dim = w1.shape[1]
    is_v7, vmem_cap = _device_info()

    # --- pad hidden_dim (weights/biases only, zero rows/cols) to lane alignment.
    #     input_dim is deliberately NOT padded so x never has to be rewritten in HBM.
    h_pad = _round_up(hidden_dim, 128)
    dh = h_pad - hidden_dim
    w1_bf = (jnp.pad(w1, ((0, 0), (0, dh))) if dh else w1).astype(jnp.bfloat16)
    w2_bf = (jnp.pad(w2, ((0, dh), (0, dh))) if dh else w2).astype(jnp.bfloat16)
    w3_row = w3.reshape(1, hidden_dim)
    w3_row = (jnp.pad(w3_row, ((0, 0), (0, dh))) if dh else w3_row).astype(jnp.bfloat16)
    b1_2d = b1.reshape(1, hidden_dim).astype(jnp.float32)
    b2_2d = b2.reshape(1, hidden_dim).astype(jnp.float32)
    if dh:
        b1_2d = jnp.pad(b1_2d, ((0, 0), (0, dh)))
        b2_2d = jnp.pad(b2_2d, ((0, 0), (0, dh)))
    b3_s = b3.reshape((1,)).astype(jnp.float32)                     # scalar -> SMEM

    # --- batch tile selection -------------------------------------------------
    if batch_block is not None:
        tb = int(batch_block)
        assert tb > 0, "batch_block must be positive"
    else:
        # small hidden => x-DMA / step-overhead bound: bigger tiles on 1-TC parts.
        tb = 1024 if (hidden_dim <= 256 and not is_v7) else 512
    tb = max(16, min(tb, _round_up(B, 16)))
    if is_v7 and B >= 256:
        # 2 TensorCores: make sure the 'parallel' grid axis has >= 2 steps.
        tb = min(tb, _round_up((B + 1) // 2, 128))
    tb = _round_up(tb, 128) if tb < B else _round_up(tb, 16)

    # --- VMEM budget: I/O blocks + resident weights + live intermediates ------
    weight_bytes = (input_dim * h_pad + h_pad * h_pad + h_pad) * 2 + 2 * h_pad * 4

    def vmem_est(tb_):
        return (2 * tb_ * input_dim * 4          # x tile (f32, double-buffered)
                + 2 * tb_ * 4                    # out tile (f32, double-buffered)
                + 2 * weight_bytes               # weights/biases (worst case 2 bufs)
                + tb_ * input_dim * 2            # in-kernel bf16 copy of x
                + 2 * tb_ * h_pad * (4 + 2))     # h1/h2 f32 + their bf16 copies

    budget = max(vmem_cap - (16 << 20), 16 << 20)   # ~48 MiB v7x, ~112 MiB v5e/v6e
    while tb > 128 and vmem_est(tb) > budget:
        tb = max(128, _round_up(tb // 2, 128))

    B_pad = _round_up(B, tb)
    grid = (B_pad // tb,)
    vmem_limit = int(min(max(vmem_est(tb) + (4 << 20), 16 << 20), budget))

    # Padded batch rows are zeros; they flow through harmlessly and are sliced off.
    x_p = x if B_pad == B else jnp.pad(x, ((0, B_pad - B), (0, 0)))

    cost = pl.CostEstimate(
        flops=int(2 * B_pad * (input_dim * h_pad + h_pad * h_pad + h_pad)),
        transcendentals=int(2 * B_pad),              # sigmoid = exp + reciprocal
        bytes_accessed=int(B_pad * input_dim * x_p.dtype.itemsize
                           + weight_bytes + 4 + B_pad * 4),
    )

    def run(single_buffer_weights):
        if single_buffer_weights:
            # Grid-invariant blocks are DMA'd once; don't reserve a second buffer.
            def wspec(shape):
                return pl.BlockSpec(shape, lambda i: (0,) * len(shape),
                                    pipeline_mode=pl.Buffered(1))
        else:
            def wspec(shape):
                return pl.BlockSpec(shape, lambda i: (0,) * len(shape))

        return pl.pallas_call(
            _discriminator_kernel,
            out_shape=jax.ShapeDtypeStruct((1, B_pad), jnp.float32),
            grid_spec=pltpu.PrefetchScalarGridSpec(
                num_scalar_prefetch=0,
                grid=grid,
                in_specs=[
                    pl.BlockSpec((tb, input_dim), lambda i: (i, 0)),    # x tile (streamed)
                    wspec((input_dim, h_pad)),                          # w1 (resident)
                    wspec((1, h_pad)),                                  # b1
                    wspec((h_pad, h_pad)),                              # w2
                    wspec((1, h_pad)),                                  # b2
                    wspec((1, h_pad)),                                  # w3 as a row
                    pl.BlockSpec(memory_space=pltpu.MemorySpace.SMEM),  # b3 scalar
                ],
                out_specs=pl.BlockSpec((1, tb), lambda i: (0, i)),      # lane-dense row
            ),
            compiler_params=pltpu.CompilerParams(
                dimension_semantics=("parallel",),
                vmem_limit_bytes=vmem_limit,
            ),
            cost_estimate=cost,
        )(x_p, w1_bf, b1_2d, w2_bf, b2_2d, w3_row, b3_s)

    try:
        out_row = run(True)
    except Exception:
        # pipeline_mode / Buffered(1) unsupported on this jax version: default buffering.
        out_row = run(False)

    return out_row[0, :B].reshape(B, 1)


def init_params(key, input_dim, hidden_dim):
    """Deterministic parameter init (PyTorch-Linear-like uniform bounds)."""
    ks = jax.random.split(key, 6)

    def linear(kw, kb, fan_in, fan_out):
        bound = 1.0 / jnp.sqrt(jnp.float32(fan_in))
        w = jax.random.uniform(kw, (fan_in, fan_out), jnp.float32, -bound, bound)
        b = jax.random.uniform(kb, (1, fan_out), jnp.float32, -bound, bound)
        return w, b

    w1, b1 = linear(ks[0], ks[1], input_dim, hidden_dim)
    w2, b2 = linear(ks[2], ks[3], hidden_dim, hidden_dim)
    w3, b3 = linear(ks[4], ks[5], hidden_dim, 1)
    return {"w1": w1, "b1": b1, "w2": w2, "b2": b2, "w3": w3, "b3": b3}


def _reference_forward(x, p):
    h1 = x @ p["w1"] + p["b1"]
    h1 = jnp.where(h1 > 0, h1, 0.2 * h1)
    h2 = h1 @ p["w2"] + p["b2"]
    h2 = jnp.where(h2 > 0, h2, 0.2 * h2)
    logits = h2 @ p["w3"] + p["b3"]
    return jax.nn.sigmoid(logits)


if __name__ == "__main__":
    key = jax.random.PRNGKey(0)
    k_x, k_p = jax.random.split(key)

    batch, input_dim, hidden_dim = 16, 32, 32
    x = jax.random.normal(k_x, (batch, input_dim), dtype=jnp.float32)
    params = init_params(k_p, input_dim, hidden_dim)

    out = discriminator_forward(x, params)
    out = jax.block_until_ready(out)

    ref = _reference_forward(x, params)
    assert out.shape == (batch, 1), out.shape
    # bf16 MXU inputs -> allow ~1e-2 deviation vs. the pure-f32 reference.
    assert jnp.allclose(out, ref, atol=3e-2, rtol=3e-2), (out, ref)

    print("KERNEL_OK")
</pallas_src>

<mosaic_0001>
module attributes {stable_mosaic.version = 11 : i64} {
  func.func @_discriminator_kernel(%arg0: i32, %arg1: memref<16x32xf32, #tpu.memory_space<vmem>>, %arg2: memref<32x128xbf16, #tpu.memory_space<vmem>>, %arg3: memref<1x128xf32, #tpu.memory_space<vmem>>, %arg4: memref<128x128xbf16, #tpu.memory_space<vmem>>, %arg5: memref<1x128xf32, #tpu.memory_space<vmem>>, %arg6: memref<1x128xbf16, #tpu.memory_space<vmem>>, %arg7: memref<1xf32, #tpu.memory_space<smem>>, %arg8: memref<1x16xf32, #tpu.memory_space<vmem>>) attributes {dimension_semantics = [#tpu.dimension_semantics<parallel>], iteration_bounds = array<i64: 1>, scalar_prefetch = 0 : i64, scratch_operands = 0 : i64, tpu.core_type = #tpu.core_type<tc>, window_params = [{transform_indices = @transform_0, window_bounds = array<i64: 16, 32>}, {pipeline_mode = #tpu.pipeline_mode<synchronous>, transform_indices = @transform_1, window_bounds = array<i64: 32, 128>}, {pipeline_mode = #tpu.pipeline_mode<synchronous>, transform_indices = @transform_2, window_bounds = array<i64: 1, 128>}, {pipeline_mode = #tpu.pipeline_mode<synchronous>, transform_indices = @transform_3, window_bounds = array<i64: 128, 128>}, {pipeline_mode = #tpu.pipeline_mode<synchronous>, transform_indices = @transform_4, window_bounds = array<i64: 1, 128>}, {pipeline_mode = #tpu.pipeline_mode<synchronous>, transform_indices = @transform_5, window_bounds = array<i64: 1, 128>}, {transform_indices = @transform_6, window_bounds = array<i64: 1>}, {transform_indices = @transform_7, window_bounds = array<i64: 1, 16>}]} {
    %c0 = arith.constant 0 : index
    %c0_0 = arith.constant 0 : index
    %0 = vector.load %arg1[%c0, %c0_0] : memref<16x32xf32, #tpu.memory_space<vmem>>, vector<16x32xf32>
    %1 = arith.truncf %0 : vector<16x32xf32> to vector<16x32xbf16>
    %c0_1 = arith.constant 0 : index
    %c0_2 = arith.constant 0 : index
    %2 = vector.load %arg2[%c0_1, %c0_2] : memref<32x128xbf16, #tpu.memory_space<vmem>>, vector<32x128xbf16>
    %cst = arith.constant dense<0.000000e+00> : vector<16x128xf32>
    %3 = tpu.matmul %1, %2, %cst {dimension_numbers = #tpu.dot_dimension_numbers<[1], [0], [0], [1], [0, 0, 1, 1], [], []>} : vector<16x32xbf16>, vector<32x128xbf16>, vector<16x128xf32> -> vector<16x128xf32>
    %c0_3 = arith.constant 0 : index
    %c0_4 = arith.constant 0 : index
    %4 = vector.load %arg3[%c0_3, %c0_4] : memref<1x128xf32, #tpu.memory_space<vmem>>, vector<1x128xf32>
    %5 = vector.broadcast %4 : vector<1x128xf32> to vector<16x128xf32>
    %6 = arith.addf %3, %5 : vector<16x128xf32>
    %cst_5 = arith.constant 2.000000e-01 : f32
    %7 = vector.broadcast %cst_5 : f32 to vector<16x128xf32>
    %8 = arith.mulf %7, %6 : vector<16x128xf32>
    %9 = arith.maximumf %6, %8 : vector<16x128xf32>
    %10 = arith.truncf %9 : vector<16x128xf32> to vector<16x128xbf16>
    %c0_6 = arith.constant 0 : index
    %c0_7 = arith.constant 0 : index
    %11 = vector.load %arg4[%c0_6, %c0_7] : memref<128x128xbf16, #tpu.memory_space<vmem>>, vector<128x128xbf16>
    %cst_8 = arith.constant dense<0.000000e+00> : vector<16x128xf32>
    %12 = tpu.matmul %10, %11, %cst_8 {dimension_numbers = #tpu.dot_dimension_numbers<[1], [0], [0], [1], [0, 0, 1, 1], [], []>} : vector<16x128xbf16>, vector<128x128xbf16>, vector<16x128xf32> -> vector<16x128xf32>
    %c0_9 = arith.constant 0 : index
    %c0_10 = arith.constant 0 : index
    %13 = vector.load %arg5[%c0_9, %c0_10] : memref<1x128xf32, #tpu.memory_space<vmem>>, vector<1x128xf32>
    %14 = vector.broadcast %13 : vector<1x128xf32> to vector<16x128xf32>
    %15 = arith.addf %12, %14 : vector<16x128xf32>
    %cst_11 = arith.constant 2.000000e-01 : f32
    %16 = vector.broadcast %cst_11 : f32 to vector<16x128xf32>
    %17 = arith.mulf %16, %15 : vector<16x128xf32>
    %18 = arith.maximumf %15, %17 : vector<16x128xf32>
    %c0_12 = arith.constant 0 : index
    %c0_13 = arith.constant 0 : index
    %19 = vector.load %arg6[%c0_12, %c0_13] : memref<1x128xbf16, #tpu.memory_space<vmem>>, vector<1x128xbf16>
    %20 = arith.truncf %18 : vector<16x128xf32> to vector<16x128xbf16>
    %cst_14 = arith.constant dense<0.000000e+00> : vector<1x16xf32>
    %21 = tpu.matmul %19, %20, %cst_14 {dimension_numbers = #tpu.dot_dimension_numbers<[1], [1], [0], [0], [0, 0, 1, 0], [], []>} : vector<1x128xbf16>, vector<16x128xbf16>, vector<1x16xf32> -> vector<1x16xf32>
    %c0_15 = arith.constant 0 : index
    %22 = memref.load %arg7[%c0_15] : memref<1xf32, #tpu.memory_space<smem>>
    %23 = vector.broadcast %22 : f32 to vector<1x16xf32>
    %24 = arith.addf %21, %23 : vector<1x16xf32>
    %25 = arith.negf %24 : vector<1x16xf32>
    %26 = math.exp %25 : vector<1x16xf32>
    %cst_16 = arith.constant 1.000000e+00 : f32
    %27 = vector.broadcast %cst_16 : f32 to vector<1x16xf32>
    %28 = arith.addf %27, %26 : vector<1x16xf32>
    %29 = arith.divf %27, %28 : vector<1x16xf32>
    %c0_17 = arith.constant 0 : index
    %c0_18 = arith.constant 0 : index
    %30 = vector.load %arg8[%c0_17, %c0_18] : memref<1x16xf32, #tpu.memory_space<vmem>>, vector<1x16xf32>
    tpu.vector_store %arg8[%c0_17, %c0_18], %29 {strides = array<i32>} : memref<1x16xf32, #tpu.memory_space<vmem>>, vector<1x16xf32>,
    return
  }
  func.func @transform_0(%arg0: i32) -> (i32, i32) {
    %c0_i32 = arith.constant 0 : i32
    %c0_i32_0 = arith.constant 0 : i32
    return %arg0, %c0_i32 : i32, i32
  }
  func.func @transform_1(%arg0: i32) -> (i32, i32) {
    %c0_i32 = arith.constant 0 : i32
    %c0_i32_0 = arith.constant 0 : i32
    %c0_i32_1 = arith.constant 0 : i32
    return %c0_i32, %c0_i32_0 : i32, i32
  }
  func.func @transform_2(%arg0: i32) -> (i32, i32) {
    %c0_i32 = arith.constant 0 : i32
    %c0_i32_0 = arith.constant 0 : i32
    %c0_i32_1 = arith.constant 0 : i32
    return %c0_i32, %c0_i32_0 : i32, i32
  }
  func.func @transform_3(%arg0: i32) -> (i32, i32) {
    %c0_i32 = arith.constant 0 : i32
    %c0_i32_0 = arith.constant 0 : i32
    %c0_i32_1 = arith.constant 0 : i32
    return %c0_i32, %c0_i32_0 : i32, i32
  }
  func.func @transform_4(%arg0: i32) -> (i32, i32) {
    %c0_i32 = arith.constant 0 : i32
    %c0_i32_0 = arith.constant 0 : i32
    %c0_i32_1 = arith.constant 0 : i32
    return %c0_i32, %c0_i32_0 : i32, i32
  }
  func.func @transform_5(%arg0: i32) -> (i32, i32) {
    %c0_i32 = arith.constant 0 : i32
    %c0_i32_0 = arith.constant 0 : i32
    %c0_i32_1 = arith.constant 0 : i32
    return %c0_i32, %c0_i32_0 : i32, i32
  }
  func.func @transform_6(%arg0: i32) -> i32 {
    %c0_i32 = arith.constant 0 : i32
    %c0_i32_0 = arith.constant 0 : i32
    return %c0_i32 : i32
  }
  func.func @transform_7(%arg0: i32) -> (i32, i32) {
    %c0_i32 = arith.constant 0 : i32
    %c0_i32_0 = arith.constant 0 : i32
    return %c0_i32, %arg0 : i32, i32
  }
}

module attributes {stable_mosaic.version = 11 : i64} {
  func.func @_discriminator_kernel(%arg0: i32, %arg1: memref<16x32xf32, #tpu.memory_space<vmem>>, %arg2: memref<32x128xbf16, #tpu.memory_space<vmem>>, %arg3: memref<1x128xf32, #tpu.memory_space<vmem>>, %arg4: memref<128x128xbf16, #tpu.memory_space<vmem>>, %arg5: memref<1x128xf32, #tpu.memory_space<vmem>>, %arg6: memref<1x128xbf16, #tpu.memory_space<vmem>>, %arg7: memref<1xf32, #tpu.memory_space<smem>>, %arg8: memref<1x16xf32, #tpu.memory_space<vmem>>) attributes {dimension_semantics = [#tpu.dimension_semantics<parallel>], iteration_bounds = array<i64: 1>, scalar_prefetch = 0 : i64, scratch_operands = 0 : i64, tpu.core_type = #tpu.core_type<tc>, window_params = [{transform_indices = @transform_0, window_bounds = array<i64: 16, 32>}, {pipeline_mode = #tpu.pipeline_mode<synchronous>, transform_indices = @transform_1, window_bounds = array<i64: 32, 128>}, {pipeline_mode = #tpu.pipeline_mode<synchronous>, transform_indices = @transform_2, window_bounds = array<i64: 1, 128>}, {pipeline_mode = #tpu.pipeline_mode<synchronous>, transform_indices = @transform_3, window_bounds = array<i64: 128, 128>}, {pipeline_mode = #tpu.pipeline_mode<synchronous>, transform_indices = @transform_4, window_bounds = array<i64: 1, 128>}, {pipeline_mode = #tpu.pipeline_mode<synchronous>, transform_indices = @transform_5, window_bounds = array<i64: 1, 128>}, {transform_indices = @transform_6, window_bounds = array<i64: 1>}, {transform_indices = @transform_7, window_bounds = array<i64: 1, 16>}]} {
    %c0 = arith.constant 0 : index
    %c0_0 = arith.constant 0 : index
    %0 = vector.load %arg1[%c0, %c0_0] : memref<16x32xf32, #tpu.memory_space<vmem>>, vector<16x32xf32>
    %1 = arith.truncf %0 : vector<16x32xf32> to vector<16x32xbf16>
    %c0_1 = arith.constant 0 : index
    %c0_2 = arith.constant 0 : index
    %2 = vector.load %arg2[%c0_1, %c0_2] : memref<32x128xbf16, #tpu.memory_space<vmem>>, vector<32x128xbf16>
    %cst = arith.constant dense<0.000000e+00> : vector<16x128xf32>
    %3 = tpu.matmul %1, %2, %cst {dimension_numbers = #tpu.dot_dimension_numbers<[1], [0], [0], [1], [0, 0, 1, 1], [], []>} : vector<16x32xbf16>, vector<32x128xbf16>, vector<16x128xf32> -> vector<16x128xf32>
    %c0_3 = arith.constant 0 : index
    %c0_4 = arith.constant 0 : index
    %4 = vector.load %arg3[%c0_3, %c0_4] : memref<1x128xf32, #tpu.memory_space<vmem>>, vector<1x128xf32>
    %5 = vector.broadcast %4 : vector<1x128xf32> to vector<16x128xf32>
    %6 = arith.addf %3, %5 : vector<16x128xf32>
    %cst_5 = arith.constant 2.000000e-01 : f32
    %7 = vector.broadcast %cst_5 : f32 to vector<16x128xf32>
    %8 = arith.mulf %7, %6 : vector<16x128xf32>
    %9 = arith.maximumf %6, %8 : vector<16x128xf32>
    %10 = arith.truncf %9 : vector<16x128xf32> to vector<16x128xbf16>
    %c0_6 = arith.constant 0 : index
    %c0_7 = arith.constant 0 : index
    %11 = vector.load %arg4[%c0_6, %c0_7] : memref<128x128xbf16, #tpu.memory_space<vmem>>, vector<128x128xbf16>
    %cst_8 = arith.constant dense<0.000000e+00> : vector<16x128xf32>
    %12 = tpu.matmul %10, %11, %cst_8 {dimension_numbers = #tpu.dot_dimension_numbers<[1], [0], [0], [1], [0, 0, 1, 1], [], []>} : vector<16x128xbf16>, vector<128x128xbf16>, vector<16x128xf32> -> vector<16x128xf32>
    %c0_9 = arith.constant 0 : index
    %c0_10 = arith.constant 0 : index
    %13 = vector.load %arg5[%c0_9, %c0_10] : memref<1x128xf32, #tpu.memory_space<vmem>>, vector<1x128xf32>
    %14 = vector.broadcast %13 : vector<1x128xf32> to vector<16x128xf32>
    %15 = arith.addf %12, %14 : vector<16x128xf32>
    %cst_11 = arith.constant 2.000000e-01 : f32
    %16 = vector.broadcast %cst_11 : f32 to vector<16x128xf32>
    %17 = arith.mulf %16, %15 : vector<16x128xf32>
    %18 = arith.maximumf %15, %17 : vector<16x128xf32>
    %c0_12 = arith.constant 0 : index
    %c0_13 = arith.constant 0 : index
    %19 = vector.load %arg6[%c0_12, %c0_13] : memref<1x128xbf16, #tpu.memory_space<vmem>>, vector<1x128xbf16>
    %20 = arith.truncf %18 : vector<16x128xf32> to vector<16x128xbf16>
    %cst_14 = arith.constant dense<0.000000e+00> : vector<1x16xf32>
    %21 = tpu.matmul %19, %20, %cst_14 {dimension_numbers = #tpu.dot_dimension_numbers<[1], [1], [0], [0], [0, 0, 1, 0], [], []>} : vector<1x128xbf16>, vector<16x128xbf16>, vector<1x16xf32> -> vector<1x16xf32>
    %c0_15 = arith.constant 0 : index
    %22 = memref.load %arg7[%c0_15] : memref<1xf32, #tpu.memory_space<smem>>
    %23 = vector.broadcast %22 : f32 to vector<1x16xf32>
    %24 = arith.addf %21, %23 : vector<1x16xf32>
    %25 = arith.negf %24 : vector<1x16xf32>
    %26 = math.exp %25 : vector<1x16xf32>
    %cst_16 = arith.constant 1.000000e+00 : f32
    %27 = vector.broadcast %cst_16 : f32 to vector<1x16xf32>
    %28 = arith.addf %27, %26 : vector<1x16xf32>
    %29 = arith.divf %27, %28 : vector<1x16xf32>
    %c0_17 = arith.constant 0 : index
    %c0_18 = arith.constant 0 : index
    %30 = vector.load %arg8[%c0_17, %c0_18] : memref<1x16xf32, #tpu.memory_space<vmem>>, vector<1x16xf32>
    tpu.vector_store %arg8[%c0_17, %c0_18], %29 {strides = array<i32>} : memref<1x16xf32, #tpu.memory_space<vmem>>, vector<1x16xf32>,
    return
  }
  func.func @transform_0(%arg0: i32) -> (i32, i32) {
    %c0_i32 = arith.constant 0 : i32
    %c0_i32_0 = arith.constant 0 : i32
    return %arg0, %c0_i32 : i32, i32
  }
  func.func @transform_1(%arg0: i32) -> (i32, i32) {
    %c0_i32 = arith.constant 0 : i32
    %c0_i32_0 = arith.constant 0 : i32
    %c0_i32_1 = arith.constant 0 : i32
    return %c0_i32, %c0_i32_0 : i32, i32
  }
  func.func @transform_2(%arg0: i32) -> (i32, i32) {
    %c0_i32 = arith.constant 0 : i32
    %c0_i32_0 = arith.constant 0 : i32
    %c0_i32_1 = arith.constant 0 : i32
    return %c0_i32, %c0_i32_0 : i32, i32
  }
  func.func @transform_3(%arg0: i32) -> (i32, i32) {
    %c0_i32 = arith.constant 0 : i32
    %c0_i32_0 = arith.constant 0 : i32
    %c0_i32_1 = arith.constant 0 : i32
    return %c0_i32, %c0_i32_0 : i32, i32
  }
  func.func @transform_4(%arg0: i32) -> (i32, i32) {
    %c0_i32 = arith.constant 0 : i32
    %c0_i32_0 = arith.constant 0 : i32
    %c0_i32_1 = arith.constant 0 : i32
    return %c0_i32, %c0_i32_0 : i32, i32
  }
  func.func @transform_5(%arg0: i32) -> (i32, i32) {
    %c0_i32 = arith.constant 0 : i32
    %c0_i32_0 = arith.constant 0 : i32
    %c0_i32_1 = arith.constant 0 : i32
    return %c0_i32, %c0_i32_0 : i32, i32
  }
  func.func @transform_6(%arg0: i32) -> i32 {
    %c0_i32 = arith.constant 0 : i32
    %c0_i32_0 = arith.constant 0 : i32
    return %c0_i32 : i32
  }
  func.func @transform_7(%arg0: i32) -> (i32, i32) {
    %c0_i32 = arith.constant 0 : i32
    %c0_i32_0 = arith.constant 0 : i32
    return %c0_i32, %arg0 : i32, i32
  }
}

</mosaic_0001>

<llo_original>
// kernel: tpu_custom_call.1
$region0: #{tpu_custom_call.1}
  #allocation0 [shape = 'u32[]', space=smem, size = 0x4, offset = 0x4, fixed_abs, tag = 'smem constant byte address 0x4 - core index']
  #allocation1 [shape = 'u32[144,128]{1,0:T(1,128)}', space=vmem, size = 0x12000, scoped, tag = 'internal scratch']
  #allocation2 [shape = 'f32[1]{0:T(128)S(6)}', space=smem, size = 0x200, scoped, tag = 'scoped memory for tpu_custom_call.1']
  %s0 = inlined_call_operand.hbm [shape: f32[16,32], index: 0, kind: input, shape index: {}]
  %s1 = inlined_call_operand.hbm [shape: bf16[32,128], index: 1, kind: input, shape index: {}]
  %s2 = inlined_call_operand.vmem [shape: f32[1,128], index: 2, kind: input, shape index: {}]
  %s3 = inlined_call_operand.hbm [shape: bf16[128,128], index: 3, kind: input, shape index: {}]
  %s4 = inlined_call_operand.vmem [shape: f32[1,128], index: 4, kind: input, shape index: {}]
  %s5 = inlined_call_operand.vmem [shape: bf16[1,128], index: 5, kind: input, shape index: {}]
  %s6 = inlined_call_operand.<no memory space> [shape: f32[1], index: 6, kind: input, shape index: {}]
  %s7 = inlined_call_operand.hbm [shape: f32[1,16], index: 7, kind: output, shape index: {}]
  %s8 = sld [smem:[#allocation0]]
  $region50: #{tpu_custom_call.1} parent=0
    _
  %s10 = ssub.s32 1, %s8
  %s11 = scalar_select 0, %s10, %s8
  %12 = sst [smem:[#allocation2]] %s6
  $region1: #{tpu_custom_call.1} parent=0
    #allocation3 [shape = 'u8[8192]{0}', space=vmem, size = 0x2000, scoped, tag = 'input window, operand 0, single buffered']
    #allocation4 [shape = 's32[1]{0}', space=sflag, size = 0x4, scoped, tag = 'scoped memory for tpu_custom_call.1']
    #allocation5 [shape = 's32[1]{0}', space=sflag, size = 0x4, scoped, tag = 'scoped memory for tpu_custom_call.1']
    #allocation6 [shape = 'u8[8192]{0}', space=vmem, size = 0x2000, scoped, tag = 'input window, operand 1, single buffered']
    #allocation7 [shape = 's32[1]{0}', space=sflag, size = 0x4, scoped, tag = 'scoped memory for tpu_custom_call.1']
    #allocation8 [shape = 'u8[32768]{0}', space=vmem, size = 0x8000, scoped, tag = 'input window, operand 3, single buffered']
    #allocation9 [shape = 'u8[512]{0}', space=vmem, size = 0x400, scoped, tag = 'output window, operand 0, single buffered']
    %13 = vsyncpa [#allocation4], 0
    %14 = vsyncpa [#allocation7], 0
    %15 = vsyncpa [#allocation5], 0
    // Predicated region
    $region2: #{tpu_custom_call.1} parent=1 // pred_check
      _
    $region3: #{tpu_custom_call.1} parent=1 // pred_check_branch
      %17 = sbr.rel (0) target = $region5
    $region4: #{tpu_custom_call.1} parent=1 // pred_region
      %s19 = ssub.s32 256, 256
      %20 = vsyncadd [#allocation4], %s19
      %s21 = sshll.u32 [#allocation3], 4
      %s22 = int_to_ptr.vmem [resolvable:$true] %s21
      %27 = dma.hbm_to_vmem [thread:$0]  %s0, 256, %s22, [#allocation4], 128, 128, 8
    $region5: #{tpu_custom_call.1} parent=1 // pred_fallthru
      _
    // Predicated region
    $region6: #{tpu_custom_call.1} parent=1 // pred_check
      _
    $region7: #{tpu_custom_call.1} parent=1 // pred_check_branch
      %29 = sbr.rel (0) target = $region9
    $region8: #{tpu_custom_call.1} parent=1 // pred_region
      %s31 = ssub.s32 256, 256
      %32 = vsyncadd [#allocation7], %s31
      %s33 = sshll.u32 [#allocation6], 4
      %s34 = int_to_ptr.vmem [resolvable:$true] %s33
      %39 = dma.hbm_to_vmem [thread:$0]  %s1, 256, %s34, [#allocation7], 64, 64, 4
    $region9: #{tpu_custom_call.1} parent=1 // pred_fallthru
      _
    // Predicated region
    $region10: #{tpu_custom_call.1} parent=1 // pred_check
      _
    $region11: #{tpu_custom_call.1} parent=1 // pred_check_branch
      %41 = sbr.rel (0) target = $region13
    $region12: #{tpu_custom_call.1} parent=1 // pred_region
      _
    $region13: #{tpu_custom_call.1} parent=1 // pred_fallthru
      _
    // Predicated region
    $region14: #{tpu_custom_call.1} parent=1 // pred_check
      _
    $region15: #{tpu_custom_call.1} parent=1 // pred_check_branch
      %43 = sbr.rel (0) target = $region17
    $region16: #{tpu_custom_call.1} parent=1 // pred_region
      %s45 = ssub.s32 1024, 1024
      %46 = vsyncadd [#allocation7], %s45
      %s47 = sshll.u32 [#allocation8], 4
      %s48 = int_to_ptr.vmem [resolvable:$true] %s47
      %53 = dma.hbm_to_vmem [thread:$0]  %s3, 1024, %s48, [#allocation7], 64, 64, 4
    $region17: #{tpu_custom_call.1} parent=1 // pred_fallthru
      _
    // Predicated region
    $region18: #{tpu_custom_call.1} parent=1 // pred_check
      _
    $region19: #{tpu_custom_call.1} parent=1 // pred_check_branch
      %55 = sbr.rel (0) target = $region21
    $region20: #{tpu_custom_call.1} parent=1 // pred_region
      _
    $region21: #{tpu_custom_call.1} parent=1 // pred_fallthru
      _
    // Predicated region
    $region22: #{tpu_custom_call.1} parent=1 // pred_check
      _
    $region23: #{tpu_custom_call.1} parent=1 // pred_check_branch
      %57 = sbr.rel (0) target = $region25
    $region24: #{tpu_custom_call.1} parent=1 // pred_region
      _
    $region25: #{tpu_custom_call.1} parent=1 // pred_fallthru
      _
    // Predicated region
    $region26: #{tpu_custom_call.1} parent=1 // pred_check
      _
    $region27: #{tpu_custom_call.1} parent=1 // pred_check_branch
      %59 = sbr.rel (0) target = $region29
    $region28: #{tpu_custom_call.1} parent=1 // pred_region
      _
    $region29: #{tpu_custom_call.1} parent=1 // pred_fallthru
      _
    // Predicated region
    $region30: #{tpu_custom_call.1} parent=1 // pred_check
      _
    $region31: #{tpu_custom_call.1} parent=1 // pred_check_branch
      %61 = sbr.rel (0) target = $region33
    $region32: #{tpu_custom_call.1} parent=1 // pred_region
      %62 = dma.done [#allocation4], 256
    $region33: #{tpu_custom_call.1} parent=1 // pred_fallthru
      _
    // Predicated region
    $region34: #{tpu_custom_call.1} parent=1 // pred_check
      _
    $region35: #{tpu_custom_call.1} parent=1 // pred_check_branch
      %64 = sbr.rel (0) target = $region37
    $region36: #{tpu_custom_call.1} parent=1 // pred_region
      %65 = dma.done [#allocation7], 256
    $region37: #{tpu_custom_call.1} parent=1 // pred_fallthru
      _
    // Predicated region
    $region38: #{tpu_custom_call.1} parent=1 // pred_check
      _
    $region39: #{tpu_custom_call.1} parent=1 // pred_check_branch
      %67 = sbr.rel (0) target = $region41
    $region40: #{tpu_custom_call.1} parent=1 // pred_region
      %68 = dma.done [#allocation7], 1024
    $region41: #{tpu_custom_call.1} parent=1 // pred_fallthru
      _
    %v70 = vld [vmem:[#allocation3] sm:$0xff]
    %v71 = vld [vmem:[#allocation3 + $0x8] sm:$0xff]
    %v72 = vpack.c.bf16 %v71, %v70
    %v73 = vld [vmem:[#allocation6] sm:$0xf]
    %v74 = vld [vmem:[#allocation6 + $0x4] sm:$0xf]
    %v75 = vld [vmem:[#allocation6 + $0x8] sm:$0xf]
    %v76 = vld [vmem:[#allocation6 + $0xc] sm:$0xf]
    %v77 = vld [vmem:[%s2] sm:$0x1]
    %v79 = vlaneseq
    %v80 = vshrl.u32 %v79, 7
    %v81 = vsub.s32 0, %v80
    %v82 = vrot.slane %v77, %v81
    %v88 = vunpack.c.l.b16 %v73
    %v89 = vunpack.c.l.b16 %v74
    %v90 = vunpack.c.l.b16 %v75
    %v91 = vunpack.c.l.b16 %v76
    %v92 = vpack.c.b16 %v89, %v88
    %v93 = vpack.c.b16 %v91, %v90
    %vm96 = vcmask 261120
    %v98 = vsel %vm96, %v72, 0
    %100 = vmatprep.subr.bf16.mxu0 0
    %101 = vmatpush1.bf16.msra.mxu0 %v92
    %102 = vmatprep.subr.bf16.mxu0 0
    %103 = vmatpush1.bf16.msra.mxu0 %v93
    %104 = vmatprep.subr.bf16.mxu0 0
    %105 = vmatpush1.bf16.msra.mxu0 0
    %106 = vmatprep.subr.bf16.mxu0 0
    %107 = vmatpush1.bf16.msra.mxu0 0
    %108 = vmatprep.subr.bf16.mxu0 0
    %109 = vmatpush1.bf16.msra.mxu0 0
    %110 = vmatprep.subr.bf16.mxu0 0
    %111 = vmatpush1.bf16.msra.mxu0 0
    %112 = vmatprep.subr.bf16.mxu0 0
    %113 = vmatpush1.bf16.msra.mxu0 0
    %114 = vmatprep.subr.bf16.mxu0 0
    %115 = vmatpush1.bf16.msra.mxu0 0
    %116 = vmatprep.subr.bf16.mxu0 0
    %117 = vmatpush1.bf16.msra.mxu0 0
    %118 = vmatprep.subr.bf16.mxu0 0
    %119 = vmatpush1.bf16.msra.mxu0 0
    %120 = vmatprep.subr.bf16.mxu0 0
    %121 = vmatpush1.bf16.msra.mxu0 0
    %122 = vmatprep.subr.bf16.mxu0 0
    %123 = vmatpush1.bf16.msra.mxu0 0
    %124 = vmatprep.subr.bf16.mxu0 0
    %125 = vmatpush1.bf16.msra.mxu0 0
    %126 = vmatprep.subr.bf16.mxu0 0
    %127 = vmatpush1.bf16.msra.mxu0 0
    %128 = vmatprep.subr.bf16.mxu0 0
    %129 = vmatpush1.bf16.msra.mxu0 0
    %130 = vmatprep.subr.bf16.mxu0 0
    %131 = vmatpush1.bf16.msra.mxu0 0
    %132 = vmatprep.mubr.bf16.mxu0 0
    %133 = vmatmul.mubr.bf16.gmra.mrb[0].mxu0 %v98
    %v134 = vpop.f32.mrb[0].mxu0
    %v135 = vadd.f32 %v82, %v134
    %v136 = vpop.f32.mrb[0].mxu0
    %v137 = vpop.f32.mrb[0].mxu0
    %v138 = vadd.f32 %v82, %v137
    %v139 = vpop.f32.mrb[0].mxu0
    %140 = vdwg.mxu0
    %v141 = vmul.f32 %v135, 0.2
    %v142 = vmul.f32 %v138, 0.2
    %v143 = vmax.f32 %v135, %v141
    %v144 = vmax.f32 %v138, %v142
    %v145 = vpack.c.bf16 %v144, %v143
    %v146 = vld [vmem:[#allocation8] sm:$0xf]
    %v147 = vld [vmem:[#allocation8 + $0x4] sm:$0xf]
    %v148 = vld [vmem:[#allocation8 + $0x8] sm:$0xf]
    %v149 = vld [vmem:[#allocation8 + $0xc] sm:$0xf]
    %v150 = vld [vmem:[#allocation8 + $0x10] sm:$0xf]
    %v151 = vld [vmem:[#allocation8 + $0x14] sm:$0xf]
    %v152 = vld [vmem:[#allocation8 + $0x18] sm:$0xf]
    %v153 = vld [vmem:[#allocation8 + $0x1c] sm:$0xf]
    %v154 = vld [vmem:[#allocation8 + $0x20] sm:$0xf]
    %v155 = vld [vmem:[#allocation8 + $0x24] sm:$0xf]
    %v156 = vld [vmem:[#allocation8 + $0x28] sm:$0xf]
    %v157 = vld [vmem:[#allocation8 + $0x2c] sm:$0xf]
    %v158 = vld [vmem:[#allocation8 + $0x30] sm:$0xf]
    %v159 = vld [vmem:[#allocation8 + $0x34] sm:$0xf]
    %v160 = vld [vmem:[#allocation8 + $0x38] sm:$0xf]
    %v161 = vld [vmem:[#allocation8 + $0x3c] sm:$0xf]
    %v162 = vld [vmem:[%s4] sm:$0x1]
    %v164 = vlaneseq
    %v165 = vshrl.u32 %v164, 7
    %v166 = vsub.s32 0, %v165
    %v167 = vrot.slane %v162, %v166
    %v185 = vunpack.c.l.b16 %v146
    %v186 = vunpack.c.l.b16 %v147
    %v187 = vunpack.c.l.b16 %v148
    %v188 = vunpack.c.l.b16 %v149
    %v189 = vunpack.c.l.b16 %v150
    %v190 = vunpack.c.l.b16 %v151
    %v191 = vunpack.c.l.b16 %v152
    %v192 = vunpack.c.l.b16 %v153
    %v193 = vunpack.c.l.b16 %v154
    %v194 = vunpack.c.l.b16 %v155
    %v195 = vunpack.c.l.b16 %v156
    %v196 = vunpack.c.l.b16 %v157
    %v197 = vunpack.c.l.b16 %v158
    %v198 = vunpack.c.l.b16 %v159
    %v199 = vunpack.c.l.b16 %v160
    %v200 = vunpack.c.l.b16 %v161
    %v201 = vpack.c.b16 %v186, %v185
    %v202 = vpack.c.b16 %v188, %v187
    %v203 = vpack.c.b16 %v190, %v189
    %v204 = vpack.c.b16 %v192, %v191
    %v205 = vpack.c.b16 %v194, %v193
    %v206 = vpack.c.b16 %v196, %v195
    %v207 = vpack.c.b16 %v198, %v197
    %v208 = vpack.c.b16 %v200, %v199
    %217 = vmatprep.subr.bf16.mxu0 0
    %218 = vmatpush1.bf16.msra.mxu0 %v201
    %219 = vmatprep.subr.bf16.mxu0 0
    %220 = vmatpush1.bf16.msra.mxu0 %v202
    %221 = vmatprep.subr.bf16.mxu0 0
    %222 = vmatpush1.bf16.msra.mxu0 %v203
    %223 = vmatprep.subr.bf16.mxu0 0
    %224 = vmatpush1.bf16.msra.mxu0 %v204
    %225 = vmatprep.subr.bf16.mxu0 0
    %226 = vmatpush1.bf16.msra.mxu0 %v205
    %227 = vmatprep.subr.bf16.mxu0 0
    %228 = vmatpush1.bf16.msra.mxu0 %v206
    %229 = vmatprep.subr.bf16.mxu0 0
    %230 = vmatpush1.bf16.msra.mxu0 %v207
    %231 = vmatprep.subr.bf16.mxu0 0
    %232 = vmatpush1.bf16.msra.mxu0 %v208
    %233 = vmatprep.subr.bf16.mxu0 0
    %234 = vmatpush1.bf16.msra.mxu0 0
    %235 = vmatprep.subr.bf16.mxu0 0
    %236 = vmatpush1.bf16.msra.mxu0 0
    %237 = vmatprep.subr.bf16.mxu0 0
    %238 = vmatpush1.bf16.msra.mxu0 0
    %239 = vmatprep.subr.bf16.mxu0 0
    %240 = vmatpush1.bf16.msra.mxu0 0
    %241 = vmatprep.subr.bf16.mxu0 0
    %242 = vmatpush1.bf16.msra.mxu0 0
    %243 = vmatprep.subr.bf16.mxu0 0
    %244 = vmatpush1.bf16.msra.mxu0 0
    %245 = vmatprep.subr.bf16.mxu0 0
    %246 = vmatpush1.bf16.msra.mxu0 0
    %247 = vmatprep.subr.bf16.mxu0 0
    %248 = vmatpush1.bf16.msra.mxu0 0
    %249 = vmatprep.mubr.bf16.mxu0 0
    %250 = vmatmul.mubr.bf16.gmra.mrb[0].mxu0 %v145
    %v251 = vpop.f32.mrb[0].mxu0
    %v252 = vadd.f32 %v167, %v251
    %v253 = vpop.f32.mrb[0].mxu0
    %v254 = vpop.f32.mrb[0].mxu0
    %v255 = vadd.f32 %v167, %v254
    %v256 = vpop.f32.mrb[0].mxu0
    %257 = vdwg.mxu0
    %v258 = vmul.f32 %v252, 0.2
    %v259 = vmul.f32 %v255, 0.2
    %v260 = vmax.f32 %v252, %v258
    %v261 = vmax.f32 %v255, %v259
    %v262 = vld [vmem:[%s5] sm:$0x1]
    %v263 = vpack.c.bf16 %v261, %v260
    %s264 = sld [smem:[#allocation2]]
    %v265 = vstv %s264
    %266 = vmatprep.subr.bf16.mxu0 0
    %267 = vmatpush1.bf16.xpose.msra.mxu0 %v263
    %268 = vmatprep.subr.bf16.mxu0 0
    %269 = vmatpush1.bf16.xpose.msra.mxu0 0
    %270 = vmatprep.subr.bf16.mxu0 0
    %271 = vmatpush1.bf16.xpose.msra.mxu0 0
    %272 = vmatprep.subr.bf16.mxu0 0
    %273 = vmatpush1.bf16.xpose.msra.mxu0 0
    %274 = vmatprep.subr.bf16.mxu0 0
    %275 = vmatpush1.bf16.xpose.msra.mxu0 0
    %276 = vmatprep.subr.bf16.mxu0 0
    %277 = vmatpush1.bf16.xpose.msra.mxu0 0
    %278 = vmatprep.subr.bf16.mxu0 0
    %279 = vmatpush1.bf16.xpose.msra.mxu0 0
    %280 = vmatprep.subr.bf16.mxu0 0
    %281 = vmatpush1.bf16.xpose.msra.mxu0 0
    %282 = vmatprep.subr.bf16.mxu0 0
    %283 = vmatpush1.bf16.xpose.msra.mxu0 0
    %284 = vmatprep.subr.bf16.mxu0 0
    %285 = vmatpush1.bf16.xpose.msra.mxu0 0
    %286 = vmatprep.subr.bf16.mxu0 0
    %287 = vmatpush1.bf16.xpose.msra.mxu0 0
    %288 = vmatprep.subr.bf16.mxu0 0
    %289 = vmatpush1.bf16.xpose.msra.mxu0 0
    %290 = vmatprep.subr.bf16.mxu0 0
    %291 = vmatpush1.bf16.xpose.msra.mxu0 0
    %292 = vmatprep.subr.bf16.mxu0 0
    %293 = vmatpush1.bf16.xpose.msra.mxu0 0
    %294 = vmatprep.subr.bf16.mxu0 0
    %295 = vmatpush1.bf16.xpose.msra.mxu0 0
    %296 = vmatprep.subr.bf16.mxu0 0
    %297 = vmatpush1.bf16.xpose.msra.mxu0 0
    %298 = vmatprep.mubr.bf16.mxu0 0
    %299 = vmatmul.mubr.bf16.gmra.mrb[0].mxu0 %v262
    %v300 = vpop.f32.mrb[0].mxu0
    %v301 = vadd.f32 %v265, %v300
    %v302 = vpop.f32.mrb[0].mxu0
    %v303 = vpop.f32.mrb[0].mxu0
    %v304 = vpop.f32.mrb[0].mxu0
    %305 = vdwg.mxu0
    %v306 = vxor.u32 %v301, 2147483648
    %v307 = vmul.f32 %v306, 1.442695
    %v308 = vpow.pop %v307
    %v309 = vadd.f32 %v308, 1.0
    %v310 = vrcp.pop %v309
    %v311 = vmul.f32 1.0, %v310
    %vm312 = vcmask 122880
    %313 = vst.msk [vmem:[#allocation9] sm:$0x1] %vm312, %v311
    // Predicated region
    $region42: #{tpu_custom_call.1} parent=1 // pred_check
      _
    $region43: #{tpu_custom_call.1} parent=1 // pred_check_branch
      %315 = sbr.rel (0) target = $region45
    $region44: #{tpu_custom_call.1} parent=1 // pred_region
      %s317 = ssub.s32 16, 16
      %318 = vsyncadd [#allocation5], %s317
      %s320 = sshll.u32 [#allocation9], 4
      %s321 = int_to_ptr.vmem [resolvable:$true] %s320
      %323 = dma.vmem_to_hbm [thread:$0]  %s321, 16, %s7, [#allocation5]
    $region45: #{tpu_custom_call.1} parent=1 // pred_fallthru
      _
    // Predicated region
    $region46: #{tpu_custom_call.1} parent=1 // pred_check
      _
    $region47: #{tpu_custom_call.1} parent=1 // pred_check_branch
      %325 = sbr.rel (0) target = $region49
    $region48: #{tpu_custom_call.1} parent=1 // pred_region
      %326 = dma.done [#allocation5], 16
    $region49: #{tpu_custom_call.1} parent=1 // pred_fallthru
      _
    %327 = vsyncpa [#allocation4], 1
    %328 = vsyncpa [#allocation7], 1
    %329 = vsyncpa [#allocation5], 1

// kernel: tpu_custom_call.1
$region0: #{tpu_custom_call.1}
  #allocation0 [shape = 'u32[]', space=smem, size = 0x4, offset = 0x4, fixed_abs, tag = 'smem constant byte address 0x4 - core index']
  #allocation1 [shape = 'u32[144,128]{1,0:T(1,128)}', space=vmem, size = 0x12000, scoped, tag = 'internal scratch']
  #allocation2 [shape = 'f32[1]{0:T(128)S(6)}', space=smem, size = 0x200, scoped, tag = 'scoped memory for tpu_custom_call.1']
  %s0 = inlined_call_operand.hbm [shape: f32[16,32], index: 0, kind: input, shape index: {}]
  %s1 = inlined_call_operand.hbm [shape: bf16[32,128], index: 1, kind: input, shape index: {}]
  %s2 = inlined_call_operand.vmem [shape: f32[1,128], index: 2, kind: input, shape index: {}]
  %s3 = inlined_call_operand.hbm [shape: bf16[128,128], index: 3, kind: input, shape index: {}]
  %s4 = inlined_call_operand.vmem [shape: f32[1,128], index: 4, kind: input, shape index: {}]
  %s5 = inlined_call_operand.vmem [shape: bf16[1,128], index: 5, kind: input, shape index: {}]
  %s6 = inlined_call_operand.<no memory space> [shape: f32[1], index: 6, kind: input, shape index: {}]
  %s7 = inlined_call_operand.hbm [shape: f32[1,16], index: 7, kind: output, shape index: {}]
  %s8 = sld [smem:[#allocation0]]
  $region50: #{tpu_custom_call.1} parent=0
    _
  %s10 = ssub.s32 1, %s8
  %s11 = scalar_select 0, %s10, %s8
  %12 = sst [smem:[#allocation2]] %s6
  $region1: #{tpu_custom_call.1} parent=0
    #allocation3 [shape = 'u8[8192]{0}', space=vmem, size = 0x2000, scoped, tag = 'input window, operand 0, single buffered']
    #allocation4 [shape = 's32[1]{0}', space=sflag, size = 0x4, scoped, tag = 'scoped memory for tpu_custom_call.1']
    #allocation5 [shape = 's32[1]{0}', space=sflag, size = 0x4, scoped, tag = 'scoped memory for tpu_custom_call.1']
    #allocation6 [shape = 'u8[8192]{0}', space=vmem, size = 0x2000, scoped, tag = 'input window, operand 1, single buffered']
    #allocation7 [shape = 's32[1]{0}', space=sflag, size = 0x4, scoped, tag = 'scoped memory for tpu_custom_call.1']
    #allocation8 [shape = 'u8[32768]{0}', space=vmem, size = 0x8000, scoped, tag = 'input window, operand 3, single buffered']
    #allocation9 [shape = 'u8[512]{0}', space=vmem, size = 0x400, scoped, tag = 'output window, operand 0, single buffered']
    %13 = vsyncpa [#allocation4], 0
    %14 = vsyncpa [#allocation7], 0
    %15 = vsyncpa [#allocation5], 0
    // Predicated region
    $region2: #{tpu_custom_call.1} parent=1 // pred_check
      _
    $region3: #{tpu_custom_call.1} parent=1 // pred_check_branch
      %17 = sbr.rel (0) target = $region5
    $region4: #{tpu_custom_call.1} parent=1 // pred_region
      %s19 = ssub.s32 256, 256
      %20 = vsyncadd [#allocation4], %s19
      %s21 = sshll.u32 [#allocation3], 4
      %s22 = int_to_ptr.vmem [resolvable:$true] %s21
      %27 = dma.hbm_to_vmem [thread:$0]  %s0, 256, %s22, [#allocation4], 128, 128, 8
    $region5: #{tpu_custom_call.1} parent=1 // pred_fallthru
      _
    // Predicated region
    $region6: #{tpu_custom_call.1} parent=1 // pred_check
      _
    $region7: #{tpu_custom_call.1} parent=1 // pred_check_branch
      %29 = sbr.rel (0) target = $region9
    $region8: #{tpu_custom_call.1} parent=1 // pred_region
      %s31 = ssub.s32 256, 256
      %32 = vsyncadd [#allocation7], %s31
      %s33 = sshll.u32 [#allocation6], 4
      %s34 = int_to_ptr.vmem [resolvable:$true] %s33
      %39 = dma.hbm_to_vmem [thread:$0]  %s1, 256, %s34, [#allocation7], 64, 64, 4
    $region9: #{tpu_custom_call.1} parent=1 // pred_fallthru
      _
    // Predicated region
    $region10: #{tpu_custom_call.1} parent=1 // pred_check
      _
    $region11: #{tpu_custom_call.1} parent=1 // pred_check_branch
      %41 = sbr.rel (0) target = $region13
    $region12: #{tpu_custom_call.1} parent=1 // pred_region
      _
    $region13: #{tpu_custom_call.1} parent=1 // pred_fallthru
      _
    // Predicated region
    $region14: #{tpu_custom_call.1} parent=1 // pred_check
      _
    $region15: #{tpu_custom_call.1} parent=1 // pred_check_branch
      %43 = sbr.rel (0) target = $region17
    $region16: #{tpu_custom_call.1} parent=1 // pred_region
      %s45 = ssub.s32 1024, 1024
      %46 = vsyncadd [#allocation7], %s45
      %s47 = sshll.u32 [#allocation8], 4
      %s48 = int_to_ptr.vmem [resolvable:$true] %s47
      %53 = dma.hbm_to_vmem [thread:$0]  %s3, 1024, %s48, [#allocation7], 64, 64, 4
    $region17: #{tpu_custom_call.1} parent=1 // pred_fallthru
      _
    // Predicated region
    $region18: #{tpu_custom_call.1} parent=1 // pred_check
      _
    $region19: #{tpu_custom_call.1} parent=1 // pred_check_branch
      %55 = sbr.rel (0) target = $region21
    $region20: #{tpu_custom_call.1} parent=1 // pred_region
      _
    $region21: #{tpu_custom_call.1} parent=1 // pred_fallthru
      _
    // Predicated region
    $region22: #{tpu_custom_call.1} parent=1 // pred_check
      _
    $region23: #{tpu_custom_call.1} parent=1 // pred_check_branch
      %57 = sbr.rel (0) target = $region25
    $region24: #{tpu_custom_call.1} parent=1 // pred_region
      _
    $region25: #{tpu_custom_call.1} parent=1 // pred_fallthru
      _
    // Predicated region
    $region26: #{tpu_custom_call.1} parent=1 // pred_check
      _
    $region27: #{tpu_custom_call.1} parent=1 // pred_check_branch
      %59 = sbr.rel (0) target = $region29
    $region28: #{tpu_custom_call.1} parent=1 // pred_region
      _
    $region29: #{tpu_custom_call.1} parent=1 // pred_fallthru
      _
    // Predicated region
    $region30: #{tpu_custom_call.1} parent=1 // pred_check
      _
    $region31: #{tpu_custom_call.1} parent=1 // pred_check_branch
      %61 = sbr.rel (0) target = $region33
    $region32: #{tpu_custom_call.1} parent=1 // pred_region
      %62 = dma.done [#allocation4], 256
    $region33: #{tpu_custom_call.1} parent=1 // pred_fallthru
      _
    // Predicated region
    $region34: #{tpu_custom_call.1} parent=1 // pred_check
      _
    $region35: #{tpu_custom_call.1} parent=1 // pred_check_branch
      %64 = sbr.rel (0) target = $region37
    $region36: #{tpu_custom_call.1} parent=1 // pred_region
      %65 = dma.done [#allocation7], 256
    $region37: #{tpu_custom_call.1} parent=1 // pred_fallthru
      _
    // Predicated region
    $region38: #{tpu_custom_call.1} parent=1 // pred_check
      _
    $region39: #{tpu_custom_call.1} parent=1 // pred_check_branch
      %67 = sbr.rel (0) target = $region41
    $region40: #{tpu_custom_call.1} parent=1 // pred_region
      %68 = dma.done [#allocation7], 1024
    $region41: #{tpu_custom_call.1} parent=1 // pred_fallthru
      _
    %v70 = vld [vmem:[#allocation3] sm:$0xff]
    %v71 = vld [vmem:[#allocation3 + $0x8] sm:$0xff]
    %v72 = vpack.c.bf16 %v71, %v70
    %v73 = vld [vmem:[#allocation6] sm:$0xf]
    %v74 = vld [vmem:[#allocation6 + $0x4] sm:$0xf]
    %v75 = vld [vmem:[#allocation6 + $0x8] sm:$0xf]
    %v76 = vld [vmem:[#allocation6 + $0xc] sm:$0xf]
    %v77 = vld [vmem:[%s2] sm:$0x1]
    %v79 = vlaneseq
    %v80 = vshrl.u32 %v79, 7
    %v81 = vsub.s32 0, %v80
    %v82 = vrot.slane %v77, %v81
    %v88 = vunpack.c.l.b16 %v73
    %v89 = vunpack.c.l.b16 %v74
    %v90 = vunpack.c.l.b16 %v75
    %v91 = vunpack.c.l.b16 %v76
    %v92 = vpack.c.b16 %v89, %v88
    %v93 = vpack.c.b16 %v91, %v90
    %vm96 = vcmask 261120
    %v98 = vsel %vm96, %v72, 0
    %100 = vmatprep.subr.bf16.mxu0 0
    %101 = vmatpush1.bf16.msra.mxu0 %v92
    %102 = vmatprep.subr.bf16.mxu0 0
    %103 = vmatpush1.bf16.msra.mxu0 %v93
    %104 = vmatprep.subr.bf16.mxu0 0
    %105 = vmatpush1.bf16.msra.mxu0 0
    %106 = vmatprep.subr.bf16.mxu0 0
    %107 = vmatpush1.bf16.msra.mxu0 0
    %108 = vmatprep.subr.bf16.mxu0 0
    %109 = vmatpush1.bf16.msra.mxu0 0
    %110 = vmatprep.subr.bf16.mxu0 0
    %111 = vmatpush1.bf16.msra.mxu0 0
    %112 = vmatprep.subr.bf16.mxu0 0
    %113 = vmatpush1.bf16.msra.mxu0 0
    %114 = vmatprep.subr.bf16.mxu0 0
    %115 = vmatpush1.bf16.msra.mxu0 0
    %116 = vmatprep.subr.bf16.mxu0 0
    %117 = vmatpush1.bf16.msra.mxu0 0
    %118 = vmatprep.subr.bf16.mxu0 0
    %119 = vmatpush1.bf16.msra.mxu0 0
    %120 = vmatprep.subr.bf16.mxu0 0
    %121 = vmatpush1.bf16.msra.mxu0 0
    %122 = vmatprep.subr.bf16.mxu0 0
    %123 = vmatpush1.bf16.msra.mxu0 0
    %124 = vmatprep.subr.bf16.mxu0 0
    %125 = vmatpush1.bf16.msra.mxu0 0
    %126 = vmatprep.subr.bf16.mxu0 0
    %127 = vmatpush1.bf16.msra.mxu0 0
    %128 = vmatprep.subr.bf16.mxu0 0
    %129 = vmatpush1.bf16.msra.mxu0 0
    %130 = vmatprep.subr.bf16.mxu0 0
    %131 = vmatpush1.bf16.msra.mxu0 0
    %132 = vmatprep.mubr.bf16.mxu0 0
    %133 = vmatmul.mubr.bf16.gmra.mrb[0].mxu0 %v98
    %v134 = vpop.f32.mrb[0].mxu0
    %v135 = vadd.f32 %v82, %v134
    %v136 = vpop.f32.mrb[0].mxu0
    %v137 = vpop.f32.mrb[0].mxu0
    %v138 = vadd.f32 %v82, %v137
    %v139 = vpop.f32.mrb[0].mxu0
    %140 = vdwg.mxu0
    %v141 = vmul.f32 %v135, 0.2
    %v142 = vmul.f32 %v138, 0.2
    %v143 = vmax.f32 %v135, %v141
    %v144 = vmax.f32 %v138, %v142
    %v145 = vpack.c.bf16 %v144, %v143
    %v146 = vld [vmem:[#allocation8] sm:$0xf]
    %v147 = vld [vmem:[#allocation8 + $0x4] sm:$0xf]
    %v148 = vld [vmem:[#allocation8 + $0x8] sm:$0xf]
    %v149 = vld [vmem:[#allocation8 + $0xc] sm:$0xf]
    %v150 = vld [vmem:[#allocation8 + $0x10] sm:$0xf]
    %v151 = vld [vmem:[#allocation8 + $0x14] sm:$0xf]
    %v152 = vld [vmem:[#allocation8 + $0x18] sm:$0xf]
    %v153 = vld [vmem:[#allocation8 + $0x1c] sm:$0xf]
    %v154 = vld [vmem:[#allocation8 + $0x20] sm:$0xf]
    %v155 = vld [vmem:[#allocation8 + $0x24] sm:$0xf]
    %v156 = vld [vmem:[#allocation8 + $0x28] sm:$0xf]
    %v157 = vld [vmem:[#allocation8 + $0x2c] sm:$0xf]
    %v158 = vld [vmem:[#allocation8 + $0x30] sm:$0xf]
    %v159 = vld [vmem:[#allocation8 + $0x34] sm:$0xf]
    %v160 = vld [vmem:[#allocation8 + $0x38] sm:$0xf]
    %v161 = vld [vmem:[#allocation8 + $0x3c] sm:$0xf]
    %v162 = vld [vmem:[%s4] sm:$0x1]
    %v164 = vlaneseq
    %v165 = vshrl.u32 %v164, 7
    %v166 = vsub.s32 0, %v165
    %v167 = vrot.slane %v162, %v166
    %v185 = vunpack.c.l.b16 %v146
    %v186 = vunpack.c.l.b16 %v147
    %v187 = vunpack.c.l.b16 %v148
    %v188 = vunpack.c.l.b16 %v149
    %v189 = vunpack.c.l.b16 %v150
    %v190 = vunpack.c.l.b16 %v151
    %v191 = vunpack.c.l.b16 %v152
    %v192 = vunpack.c.l.b16 %v153
    %v193 = vunpack.c.l.b16 %v154
    %v194 = vunpack.c.l.b16 %v155
    %v195 = vunpack.c.l.b16 %v156
    %v196 = vunpack.c.l.b16 %v157
    %v197 = vunpack.c.l.b16 %v158
    %v198 = vunpack.c.l.b16 %v159
    %v199 = vunpack.c.l.b16 %v160
    %v200 = vunpack.c.l.b16 %v161
    %v201 = vpack.c.b16 %v186, %v185
    %v202 = vpack.c.b16 %v188, %v187
    %v203 = vpack.c.b16 %v190, %v189
    %v204 = vpack.c.b16 %v192, %v191
    %v205 = vpack.c.b16 %v194, %v193
    %v206 = vpack.c.b16 %v196, %v195
    %v207 = vpack.c.b16 %v198, %v197
    %v208 = vpack.c.b16 %v200, %v199
    %217 = vmatprep.subr.bf16.mxu0 0
    %218 = vmatpush1.bf16.msra.mxu0 %v201
    %219 = vmatprep.subr.bf16.mxu0 0
    %220 = vmatpush1.bf16.msra.mxu0 %v202
    %221 = vmatprep.subr.bf16.mxu0 0
    %222 = vmatpush1.bf16.msra.mxu0 %v203
    %223 = vmatprep.subr.bf16.mxu0 0
    %224 = vmatpush1.bf16.msra.mxu0 %v204
    %225 = vmatprep.subr.bf16.mxu0 0
    %226 = vmatpush1.bf16.msra.mxu0 %v205
    %227 = vmatprep.subr.bf16.mxu0 0
    %228 = vmatpush1.bf16.msra.mxu0 %v206
    %229 = vmatprep.subr.bf16.mxu0 0
    %230 = vmatpush1.bf16.msra.mxu0 %v207
    %231 = vmatprep.subr.bf16.mxu0 0
    %232 = vmatpush1.bf16.msra.mxu0 %v208
    %233 = vmatprep.subr.bf16.mxu0 0
    %234 = vmatpush1.bf16.msra.mxu0 0
    %235 = vmatprep.subr.bf16.mxu0 0
    %236 = vmatpush1.bf16.msra.mxu0 0
    %237 = vmatprep.subr.bf16.mxu0 0
    %238 = vmatpush1.bf16.msra.mxu0 0
    %239 = vmatprep.subr.bf16.mxu0 0
    %240 = vmatpush1.bf16.msra.mxu0 0
    %241 = vmatprep.subr.bf16.mxu0 0
    %242 = vmatpush1.bf16.msra.mxu0 0
    %243 = vmatprep.subr.bf16.mxu0 0
    %244 = vmatpush1.bf16.msra.mxu0 0
    %245 = vmatprep.subr.bf16.mxu0 0
    %246 = vmatpush1.bf16.msra.mxu0 0
    %247 = vmatprep.subr.bf16.mxu0 0
    %248 = vmatpush1.bf16.msra.mxu0 0
    %249 = vmatprep.mubr.bf16.mxu0 0
    %250 = vmatmul.mubr.bf16.gmra.mrb[0].mxu0 %v145
    %v251 = vpop.f32.mrb[0].mxu0
    %v252 = vadd.f32 %v167, %v251
    %v253 = vpop.f32.mrb[0].mxu0
    %v254 = vpop.f32.mrb[0].mxu0
    %v255 = vadd.f32 %v167, %v254
    %v256 = vpop.f32.mrb[0].mxu0
    %257 = vdwg.mxu0
    %v258 = vmul.f32 %v252, 0.2
    %v259 = vmul.f32 %v255, 0.2
    %v260 = vmax.f32 %v252, %v258
    %v261 = vmax.f32 %v255, %v259
    %v262 = vld [vmem:[%s5] sm:$0x1]
    %v263 = vpack.c.bf16 %v261, %v260
    %s264 = sld [smem:[#allocation2]]
    %v265 = vstv %s264
    %266 = vmatprep.subr.bf16.mxu0 0
    %267 = vmatpush1.bf16.xpose.msra.mxu0 %v263
    %268 = vmatprep.subr.bf16.mxu0 0
    %269 = vmatpush1.bf16.xpose.msra.mxu0 0
    %270 = vmatprep.subr.bf16.mxu0 0
    %271 = vmatpush1.bf16.xpose.msra.mxu0 0
    %272 = vmatprep.subr.bf16.mxu0 0
    %273 = vmatpush1.bf16.xpose.msra.mxu0 0
    %274 = vmatprep.subr.bf16.mxu0 0
    %275 = vmatpush1.bf16.xpose.msra.mxu0 0
    %276 = vmatprep.subr.bf16.mxu0 0
    %277 = vmatpush1.bf16.xpose.msra.mxu0 0
    %278 = vmatprep.subr.bf16.mxu0 0
    %279 = vmatpush1.bf16.xpose.msra.mxu0 0
    %280 = vmatprep.subr.bf16.mxu0 0
    %281 = vmatpush1.bf16.xpose.msra.mxu0 0
    %282 = vmatprep.subr.bf16.mxu0 0
    %283 = vmatpush1.bf16.xpose.msra.mxu0 0
    %284 = vmatprep.subr.bf16.mxu0 0
    %285 = vmatpush1.bf16.xpose.msra.mxu0 0
    %286 = vmatprep.subr.bf16.mxu0 0
    %287 = vmatpush1.bf16.xpose.msra.mxu0 0
    %288 = vmatprep.subr.bf16.mxu0 0
    %289 = vmatpush1.bf16.xpose.msra.mxu0 0
    %290 = vmatprep.subr.bf16.mxu0 0
    %291 = vmatpush1.bf16.xpose.msra.mxu0 0
    %292 = vmatprep.subr.bf16.mxu0 0
    %293 = vmatpush1.bf16.xpose.msra.mxu0 0
    %294 = vmatprep.subr.bf16.mxu0 0
    %295 = vmatpush1.bf16.xpose.msra.mxu0 0
    %296 = vmatprep.subr.bf16.mxu0 0
    %297 = vmatpush1.bf16.xpose.msra.mxu0 0
    %298 = vmatprep.mubr.bf16.mxu0 0
    %299 = vmatmul.mubr.bf16.gmra.mrb[0].mxu0 %v262
    %v300 = vpop.f32.mrb[0].mxu0
    %v301 = vadd.f32 %v265, %v300
    %v302 = vpop.f32.mrb[0].mxu0
    %v303 = vpop.f32.mrb[0].mxu0
    %v304 = vpop.f32.mrb[0].mxu0
    %305 = vdwg.mxu0
    %v306 = vxor.u32 %v301, 2147483648
    %v307 = vmul.f32 %v306, 1.442695
    %v308 = vpow.pop %v307
    %v309 = vadd.f32 %v308, 1.0
    %v310 = vrcp.pop %v309
    %v311 = vmul.f32 1.0, %v310
    %vm312 = vcmask 122880
    %313 = vst.msk [vmem:[#allocation9] sm:$0x1] %vm312, %v311
    // Predicated region
    $region42: #{tpu_custom_call.1} parent=1 // pred_check
      _
    $region43: #{tpu_custom_call.1} parent=1 // pred_check_branch
      %315 = sbr.rel (0) target = $region45
    $region44: #{tpu_custom_call.1} parent=1 // pred_region
      %s317 = ssub.s32 16, 16
      %318 = vsyncadd [#allocation5], %s317
      %s320 = sshll.u32 [#allocation9], 4
      %s321 = int_to_ptr.vmem [resolvable:$true] %s320
      %323 = dma.vmem_to_hbm [thread:$0]  %s321, 16, %s7, [#allocation5]
    $region45: #{tpu_custom_call.1} parent=1 // pred_fallthru
      _
    // Predicated region
    $region46: #{tpu_custom_call.1} parent=1 // pred_check
      _
    $region47: #{tpu_custom_call.1} parent=1 // pred_check_branch
      %325 = sbr.rel (0) target = $region49
    $region48: #{tpu_custom_call.1} parent=1 // pred_region
      %326 = dma.done [#allocation5], 16
    $region49: #{tpu_custom_call.1} parent=1 // pred_fallthru
      _
    %327 = vsyncpa [#allocation4], 1
    %328 = vsyncpa [#allocation7], 1
    %329 = vsyncpa [#allocation5], 1

</llo_original>
